<compile_context>
chip_gen: v7x
topology: tpu7x:2x2x1
jax: 0.10.0
libtpu: 0.0.40
codegen_flags: <defaults>
</compile_context>

<pallas_src>
import functools

import jax
import jax.numpy as jnp
from jax import lax
from jax.experimental import pallas as pl
from jax.experimental.pallas import tpu as pltpu


def _dice_kernel(p_ref, t_ref, i_out, u_out, *,
                 hw, ts, lw, nt, n_tiles, nchunks, has_tail, has_oob):
    """Accumulate lane-parallel partial sums of intersection and union.

    p_ref, t_ref : (NC, TS) VMEM tiles of pred / target
    i_out, u_out : (1, NC, LW) output blocks, resident across the reduction
                   axis (they act as accumulators); finalized in plain JAX.
    """
    p_id = pl.program_id(0)   # parallel spatial-chunk axis (megacore on v7x)
    k = pl.program_id(1)      # arbitrary reduction axis within the chunk

    @pl.when(k == 0)
    def _():
        i_out[...] = jnp.zeros_like(i_out)
        u_out[...] = jnp.zeros_like(u_out)

    tile_idx = p_id * nt + k
    col0 = tile_idx * ts
    lane_iota = lax.broadcasted_iota(jnp.int32, (1, lw), 1)

    def accum(apply_mask):
        i_acc = i_out[0]
        u_acc = u_out[0]

        def chunk(start, i_acc, u_acc):
            # Stream one LW-wide chunk straight from the refs (a few vregs).
            pc = p_ref[:, pl.ds(start, lw)].astype(jnp.float32)
            pc = jnp.clip(pc, 1e-7, 1.0 - 1e-7)
            tc = t_ref[:, pl.ds(start, lw)].astype(jnp.float32)
            if apply_mask:
                valid = (col0 + start + lane_iota) < hw
                pc = jnp.where(valid, pc, 0.0)
                tc = jnp.where(valid, tc, 0.0)
            return i_acc + pc * tc, u_acc + (pc + tc)

        if nchunks <= 32:
            for j in range(nchunks):             # short: fully unrolled
                i_acc, u_acc = chunk(j * lw, i_acc, u_acc)
        else:
            def body(j, carry):
                start = pl.multiple_of(j * lw, lw)
                return chunk(start, *carry)
            i_acc, u_acc = lax.fori_loop(0, nchunks, body, (i_acc, u_acc),
                                         unroll=8)
        i_out[0] = i_acc
        u_out[0] = u_acc

    if has_tail:
        @pl.when(tile_idx < n_tiles - 1)          # mask-free hot path
        def _():
            accum(False)

        @pl.when(tile_idx == n_tiles - 1)         # only tile with OOB columns
        def _():
            accum(True)
    elif has_oob:
        @pl.when(tile_idx < n_tiles)              # skip fully-padded tiles
        def _():
            accum(False)
    else:
        accum(False)


def _chip_params():
    """(vmem_capacity_bytes, tensorcores_per_chip) with safe fallbacks."""
    vmem_cap = None
    try:
        vmem_cap = int(pltpu.get_tpu_info().vmem_capacity_bytes)
    except Exception:
        vmem_cap = None
    kind = ""
    try:
        kind = jax.devices()[0].device_kind.lower()
    except Exception:
        pass
    is_two_core = ("v7" in kind) or (vmem_cap is not None and
                                     vmem_cap <= (64 << 20))
    if vmem_cap is None:
        vmem_cap = (64 << 20) if is_two_core else (128 << 20)
    return vmem_cap, (2 if is_two_core else 1)


def segmentation_loss(pred, target, smooth=1e-5):
    """Pure Dice loss, matching SegmentationLoss.forward semantics."""
    N, C, H, W = pred.shape
    NC, HW = N * C, H * W

    p2 = pred.reshape(NC, HW)
    t2 = target.reshape(NC, HW)
    itemsize = max(p2.dtype.itemsize, t2.dtype.itemsize)

    # --- generation-aware VMEM budgets ------------------------------------
    vmem_cap, num_cores = _chip_params()
    if vmem_cap <= (64 << 20):          # v7x: 64 MiB per TensorCore
        input_budget = 36 << 20
        vmem_limit = 52 << 20
    else:                               # v5e / v6e: 128 MiB
        input_budget = 72 << 20
        vmem_limit = 96 << 20

    # --- accumulator lane width --------------------------------------------
    # Up to 512 lanes (>= 4 independent VPU add chains), bounded so both
    # accumulators stay within ~16 vregs even for larger NC.
    hw128 = -(-HW // 128) * 128
    lw_cap = max(128, (8192 // max(NC, 1)) // 128 * 128)
    LW = max(128, min(512, hw128, lw_cap))

    # --- spatial tile: as large as the double-buffered input budget allows --
    hw_lw = -(-HW // LW) * LW
    max_ts = input_budget // (2 * 2 * NC * itemsize)   # 2 inputs x 2 buffers
    max_ts = max(LW, (max_ts // LW) * LW)
    TS = max(LW, min(max_ts, hw_lw))

    n_tiles = -(-HW // TS)
    NP = num_cores if n_tiles >= num_cores else 1      # 2 only on v7x
    NT = -(-n_tiles // NP)
    has_tail = (HW % TS) != 0
    has_oob = (NP * NT) != n_tiles

    if has_oob:
        # Clamp so no block read is fully out of bounds; kernel skips the work.
        in_idx = lambda p, k: (0, jnp.minimum(p * NT + k, n_tiles - 1))
    else:
        in_idx = lambda p, k: (0, p * NT + k)

    kernel = functools.partial(
        _dice_kernel, hw=HW, ts=TS, lw=LW, nt=NT, n_tiles=n_tiles,
        nchunks=TS // LW, has_tail=has_tail, has_oob=has_oob)

    cost = pl.CostEstimate(
        flops=4 * NC * HW,
        transcendentals=0,
        bytes_accessed=2 * NC * HW * itemsize)

    i_part, u_part = pl.pallas_call(
        kernel,
        out_shape=(jax.ShapeDtypeStruct((NP, NC, LW), jnp.float32),
                   jax.ShapeDtypeStruct((NP, NC, LW), jnp.float32)),
        grid_spec=pltpu.PrefetchScalarGridSpec(
            num_scalar_prefetch=0,
            grid=(NP, NT),
            in_specs=[
                pl.BlockSpec((NC, TS), in_idx),
                pl.BlockSpec((NC, TS), in_idx),
            ],
            out_specs=[
                pl.BlockSpec((1, NC, LW), lambda p, k: (p, 0, 0)),
                pl.BlockSpec((1, NC, LW), lambda p, k: (p, 0, 0)),
            ],
        ),
        compiler_params=pltpu.CompilerParams(
            dimension_semantics=("parallel", "arbitrary"),
            vmem_limit_bytes=vmem_limit),
        cost_estimate=cost,
    )(p2, t2)

    # Tiny finalize in plain JAX: reduce lane/core partials, dice, mean.
    i_sum = jnp.sum(i_part, axis=(0, 2))        # (NC,)
    u_sum = jnp.sum(u_part, axis=(0, 2))        # (NC,)
    dice = (2.0 * i_sum + smooth) / (u_sum + smooth)
    return 1.0 - jnp.mean(dice)


def segmentation_loss_ref(pred, target, smooth=1e-5):
    """Plain-JAX reference (mirrors the PyTorch forward)."""
    pred = jnp.clip(pred, 1e-7, 1.0 - 1e-7)
    N, C = pred.shape[:2]
    p = pred.reshape(N, C, -1)
    t = target.reshape(N, C, -1)
    inter = jnp.sum(p * t, axis=2)
    union = jnp.sum(p, axis=2) + jnp.sum(t, axis=2)
    dice = (2.0 * inter + smooth) / (union + smooth)
    return 1.0 - jnp.mean(dice)


if __name__ == "__main__":
    key = jax.random.PRNGKey(0)
    k1, k2 = jax.random.split(key)

    N, C, H, W = 2, 4, 16, 16
    pred = jax.random.uniform(k1, (N, C, H, W), dtype=jnp.float32)
    target = (jax.random.uniform(k2, (N, C, H, W), dtype=jnp.float32) > 0.5
              ).astype(jnp.float32)

    loss = segmentation_loss(pred, target)
    jax.block_until_ready(loss)

    ref = segmentation_loss_ref(pred, target)
    assert jnp.allclose(loss, ref, atol=1e-5, rtol=1e-5), (loss, ref)

    print("KERNEL_OK")
</pallas_src>

<mosaic_0001>
module attributes {stable_mosaic.version = 11 : i64} {
  func.func @_dice_kernel(%arg0: i32, %arg1: i32, %arg2: memref<8x256xf32, #tpu.memory_space<vmem>>, %arg3: memref<8x256xf32, #tpu.memory_space<vmem>>, %arg4: memref<1x8x256xf32, #tpu.memory_space<vmem>>, %arg5: memref<1x8x256xf32, #tpu.memory_space<vmem>>) attributes {dimension_semantics = [#tpu.dimension_semantics<parallel>, #tpu.dimension_semantics<arbitrary>], iteration_bounds = array<i64: 1, 1>, scalar_prefetch = 0 : i64, scratch_operands = 0 : i64, tpu.core_type = #tpu.core_type<tc>, window_params = [{transform_indices = @transform_0, window_bounds = array<i64: 8, 256>}, {transform_indices = @transform_1, window_bounds = array<i64: 8, 256>}, {transform_indices = @transform_2, window_bounds = array<i64: 1, 8, 256>}, {transform_indices = @transform_3, window_bounds = array<i64: 1, 8, 256>}]} {
    %c0_i32 = arith.constant 0 : i32
    %0 = arith.cmpi eq, %arg1, %c0_i32 : i32
    %1 = arith.extui %0 : i1 to i32
    %c0_i32_0 = arith.constant 0 : i32
    %2 = arith.cmpi ne, %1, %c0_i32_0 : i32
    scf.if %2 {
      %cst_17 = arith.constant 0.000000e+00 : f32
      %23 = vector.broadcast %cst_17 : f32 to vector<1x8x256xf32>
      %c0_18 = arith.constant 0 : index
      %c0_19 = arith.constant 0 : index
      %c0_20 = arith.constant 0 : index
      %24 = vector.load %arg4[%c0_18, %c0_19, %c0_20] : memref<1x8x256xf32, #tpu.memory_space<vmem>>, vector<1x8x256xf32>
      tpu.vector_store %arg4[%c0_18, %c0_19, %c0_20], %23 {strides = array<i32>} : memref<1x8x256xf32, #tpu.memory_space<vmem>>, vector<1x8x256xf32>,
      %cst_21 = arith.constant 0.000000e+00 : f32
      %25 = vector.broadcast %cst_21 : f32 to vector<1x8x256xf32>
      %c0_22 = arith.constant 0 : index
      %c0_23 = arith.constant 0 : index
      %c0_24 = arith.constant 0 : index
      %26 = vector.load %arg5[%c0_22, %c0_23, %c0_24] : memref<1x8x256xf32, #tpu.memory_space<vmem>>, vector<1x8x256xf32>
      tpu.vector_store %arg5[%c0_22, %c0_23, %c0_24], %25 {strides = array<i32>} : memref<1x8x256xf32, #tpu.memory_space<vmem>>, vector<1x8x256xf32>,
    } else {
    }
    %c0 = arith.constant 0 : index
    %c0_1 = arith.constant 0 : index
    %c0_2 = arith.constant 0 : index
    %3 = vector.load %arg4[%c0, %c0_1, %c0_2] : memref<1x8x256xf32, #tpu.memory_space<vmem>>, vector<1x8x256xf32>
    %4 = vector.shape_cast %3 : vector<1x8x256xf32> to vector<8x256xf32>
    %c0_3 = arith.constant 0 : index
    %c0_4 = arith.constant 0 : index
    %c0_5 = arith.constant 0 : index
    %5 = vector.load %arg5[%c0_3, %c0_4, %c0_5] : memref<1x8x256xf32, #tpu.memory_space<vmem>>, vector<1x8x256xf32>
    %6 = vector.shape_cast %5 : vector<1x8x256xf32> to vector<8x256xf32>
    %c0_6 = arith.constant 0 : index
    %c0_7 = arith.constant 0 : index
    %7 = vector.load %arg2[%c0_6, %c0_7] : memref<8x256xf32, #tpu.memory_space<vmem>>, vector<8x256xf32>
    %cst = arith.constant 1.000000e-07 : f32
    %cst_8 = arith.constant 0.99999988 : f32
    %8 = vector.broadcast %cst : f32 to vector<8x256xf32>
    %9 = arith.maximumf %8, %7 : vector<8x256xf32>
    %10 = vector.broadcast %cst_8 : f32 to vector<8x256xf32>
    %11 = arith.minimumf %10, %9 : vector<8x256xf32>
    %c0_9 = arith.constant 0 : index
    %c0_10 = arith.constant 0 : index
    %12 = vector.load %arg3[%c0_9, %c0_10] : memref<8x256xf32, #tpu.memory_space<vmem>>, vector<8x256xf32>
    %13 = arith.mulf %11, %12 : vector<8x256xf32>
    %14 = arith.addf %4, %13 : vector<8x256xf32>
    %15 = arith.addf %11, %12 : vector<8x256xf32>
    %16 = arith.addf %6, %15 : vector<8x256xf32>
    %c0_11 = arith.constant 0 : index
    %c0_12 = arith.constant 0 : index
    %c0_13 = arith.constant 0 : index
    %17 = vector.load %arg4[%c0_11, %c0_12, %c0_13] : memref<1x8x256xf32, #tpu.memory_space<vmem>>, vector<1x8x256xf32>
    %18 = vector.shape_cast %17 : vector<1x8x256xf32> to vector<8x256xf32>
    %19 = vector.shape_cast %14 : vector<8x256xf32> to vector<1x8x256xf32>
    tpu.vector_store %arg4[%c0_11, %c0_12, %c0_13], %19 {strides = array<i32>} : memref<1x8x256xf32, #tpu.memory_space<vmem>>, vector<1x8x256xf32>,
    %c0_14 = arith.constant 0 : index
    %c0_15 = arith.constant 0 : index
    %c0_16 = arith.constant 0 : index
    %20 = vector.load %arg5[%c0_14, %c0_15, %c0_16] : memref<1x8x256xf32, #tpu.memory_space<vmem>>, vector<1x8x256xf32>
    %21 = vector.shape_cast %20 : vector<1x8x256xf32> to vector<8x256xf32>
    %22 = vector.shape_cast %16 : vector<8x256xf32> to vector<1x8x256xf32>
    tpu.vector_store %arg5[%c0_14, %c0_15, %c0_16], %22 {strides = array<i32>} : memref<1x8x256xf32, #tpu.memory_space<vmem>>, vector<1x8x256xf32>,
    return
  }
  func.func @transform_0(%arg0: i32, %arg1: i32) -> (i32, i32) {
    %c1_i32 = arith.constant 1 : i32
    %0 = arith.muli %arg0, %c1_i32 : i32
    %1 = arith.addi %0, %arg1 : i32
    %c0_i32 = arith.constant 0 : i32
    %c0_i32_0 = arith.constant 0 : i32
    return %c0_i32, %1 : i32, i32
  }
  func.func @transform_1(%arg0: i32, %arg1: i32) -> (i32, i32) {
    %c1_i32 = arith.constant 1 : i32
    %0 = arith.muli %arg0, %c1_i32 : i32
    %1 = arith.addi %0, %arg1 : i32
    %c0_i32 = arith.constant 0 : i32
    %c0_i32_0 = arith.constant 0 : i32
    return %c0_i32, %1 : i32, i32
  }
  func.func @transform_2(%arg0: i32, %arg1: i32) -> (i32, i32, i32) {
    %c0_i32 = arith.constant 0 : i32
    %c0_i32_0 = arith.constant 0 : i32
    %c0_i32_1 = arith.constant 0 : i32
    return %arg0, %c0_i32, %c0_i32_0 : i32, i32, i32
  }
  func.func @transform_3(%arg0: i32, %arg1: i32) -> (i32, i32, i32) {
    %c0_i32 = arith.constant 0 : i32
    %c0_i32_0 = arith.constant 0 : i32
    %c0_i32_1 = arith.constant 0 : i32
    return %arg0, %c0_i32, %c0_i32_0 : i32, i32, i32
  }
}

</mosaic_0001>

<llo_original>
// kernel: tpu_custom_call.1
$region0: #{tpu_custom_call.1}
  #allocation0 [shape = 'u32[]', space=smem, size = 0x4, offset = 0x4, fixed_abs, tag = 'smem constant byte address 0x4 - core index']
  #allocation1 [shape = 'u32[144,128]{1,0:T(1,128)}', space=vmem, size = 0x12000, scoped, tag = 'internal scratch']
  %s0 = inlined_call_operand.hbm [shape: f32[8,256], index: 0, kind: input, shape index: {}]
  %s1 = inlined_call_operand.hbm [shape: f32[8,256], index: 1, kind: input, shape index: {}]
  %s2 = inlined_call_operand.hbm [shape: f32[1,8,256], index: 2, kind: output, shape index: {0}]
  %s3 = inlined_call_operand.hbm [shape: f32[1,8,256], index: 3, kind: output, shape index: {1}]
  %4 = xla_tuple %s2, %s3
  %s5 = sld [smem:[#allocation0]]
  $region38: #{tpu_custom_call.1} parent=0
    _
  %s7 = ssub.s32 1, %s5
  %s8 = scalar_select 0, %s7, %s5
  $region1: #{tpu_custom_call.1} parent=0
    #allocation2 [shape = 'u8[8192]{0}', space=vmem, size = 0x2000, scoped, tag = 'input window, operand 0, single buffered']
    #allocation3 [shape = 's32[1]{0}', space=sflag, size = 0x4, scoped, tag = 'scoped memory for tpu_custom_call.1']
    #allocation4 [shape = 's32[1]{0}', space=sflag, size = 0x4, scoped, tag = 'scoped memory for tpu_custom_call.1']
    #allocation5 [shape = 'u8[8192]{0}', space=vmem, size = 0x2000, scoped, tag = 'input window, operand 1, single buffered']
    #allocation6 [shape = 's32[1]{0}', space=sflag, size = 0x4, scoped, tag = 'scoped memory for tpu_custom_call.1']
    #allocation7 [shape = 'u8[8192]{0}', space=vmem, size = 0x2000, scoped, tag = 'output window, operand 0, single buffered']
    #allocation8 [shape = 'u8[8192]{0}', space=vmem, size = 0x2000, scoped, tag = 'output window, operand 1, single buffered']
    #allocation9 [shape = 's32[1]{0}', space=sflag, size = 0x4, scoped, tag = 'scoped memory for tpu_custom_call.1']
    %9 = vsyncpa [#allocation3], 0
    %10 = vsyncpa [#allocation6], 0
    %11 = vsyncpa [#allocation4], 0
    %12 = vsyncpa [#allocation9], 0
    // Predicated region
    $region2: #{tpu_custom_call.1} parent=1 // pred_check
      _
    $region3: #{tpu_custom_call.1} parent=1 // pred_check_branch
      %14 = sbr.rel (0) target = $region5
    $region4: #{tpu_custom_call.1} parent=1 // pred_region
      %s15 = sadd.s32 0, 0
      %s16 = smul.u32 2, %s15
      %s18 = ssub.s32 256, 256
      %19 = vsyncadd [#allocation3], %s18
      %s20 = smul.addr %s16, 128
      %s21 = scalar_lea.hbm %s0, %s20
      %s23 = sshll.u32 [#allocation2], 4
      %s24 = int_to_ptr.vmem [resolvable:$true] %s23
      %26 = dma.hbm_to_vmem [thread:$0]  %s21, 256, %s24, [#allocation3]
    $region5: #{tpu_custom_call.1} parent=1 // pred_fallthru
      _
    // Predicated region
    $region6: #{tpu_custom_call.1} parent=1 // pred_check
      _
    $region7: #{tpu_custom_call.1} parent=1 // pred_check_branch
      %28 = sbr.rel (0) target = $region9
    $region8: #{tpu_custom_call.1} parent=1 // pred_region
      %s29 = sadd.s32 0, 0
      %s30 = smul.u32 2, %s29
      %s32 = ssub.s32 256, 256
      %33 = vsyncadd [#allocation6], %s32
      %s34 = smul.addr %s30, 128
      %s35 = scalar_lea.hbm %s1, %s34
      %s37 = sshll.u32 [#allocation5], 4
      %s38 = int_to_ptr.vmem [resolvable:$true] %s37
      %40 = dma.hbm_to_vmem [thread:$0]  %s35, 256, %s38, [#allocation6]
    $region9: #{tpu_custom_call.1} parent=1 // pred_fallthru
      _
    // Predicated region
    $region10: #{tpu_custom_call.1} parent=1 // pred_check
      _
    $region11: #{tpu_custom_call.1} parent=1 // pred_check_branch
      %42 = sbr.rel (0) target = $region13
    $region12: #{tpu_custom_call.1} parent=1 // pred_region
      %43 = dma.done [#allocation3], 256
    $region13: #{tpu_custom_call.1} parent=1 // pred_fallthru
      _
    // Predicated region
    $region14: #{tpu_custom_call.1} parent=1 // pred_check
      _
    $region15: #{tpu_custom_call.1} parent=1 // pred_check_branch
      %45 = sbr.rel (0) target = $region17
    $region16: #{tpu_custom_call.1} parent=1 // pred_region
      %46 = dma.done [#allocation6], 256
    $region17: #{tpu_custom_call.1} parent=1 // pred_fallthru
      _
    %s47 = sadd.s32 0, 0
    %s48 = smul.u32 2, %s47
    %s49 = sadd.s32 0, 0
    %s50 = smul.u32 2, %s49
    %p51 = scmp.eq.s32.totalorder 0, 0
    // Predicated region
    $region18: #{tpu_custom_call.1} parent=1 // pred_check
      %p52 = pneg %p51
    $region19: #{tpu_custom_call.1} parent=1 // pred_check_branch
      %54 = sbr.rel (%p52) target = $region21
    $region20: #{tpu_custom_call.1} parent=1 // pred_region
      %55 = vst [vmem:[#allocation7] sm:$0xff] 0.0
      %56 = vst [vmem:[#allocation7 + $0x8] sm:$0xff] 0.0
      %57 = vst [vmem:[#allocation8] sm:$0xff] 0.0
      %58 = vst [vmem:[#allocation8 + $0x8] sm:$0xff] 0.0
    $region21: #{tpu_custom_call.1} parent=1 // pred_fallthru
      _
    %v59 = vld [vmem:[#allocation7] sm:$0xff]
    %v60 = vld [vmem:[#allocation7 + $0x8] sm:$0xff]
    %v61 = vld [vmem:[#allocation8] sm:$0xff]
    %v62 = vld [vmem:[#allocation8 + $0x8] sm:$0xff]
    %v63 = vld [vmem:[#allocation2] sm:$0xff]
    %v64 = vld [vmem:[#allocation2 + $0x8] sm:$0xff]
    %v65 = vmax.f32 %v63, 1e-07
    %v66 = vmax.f32 %v64, 1e-07
    %v67 = vmin.f32 %v65, 0.9999999
    %v68 = vmin.f32 %v66, 0.9999999
    %v69 = vld [vmem:[#allocation5] sm:$0xff]
    %v70 = vld [vmem:[#allocation5 + $0x8] sm:$0xff]
    %v71 = vmul.f32 %v67, %v69
    %v72 = vmul.f32 %v68, %v70
    %v73 = vadd.f32 %v59, %v71
    %v74 = vadd.f32 %v60, %v72
    %v75 = vadd.f32 %v67, %v69
    %v76 = vadd.f32 %v68, %v70
    %v77 = vadd.f32 %v61, %v75
    %v78 = vadd.f32 %v62, %v76
    %79 = vst [vmem:[#allocation7] sm:$0xff] %v73
    %80 = vst [vmem:[#allocation7 + $0x8] sm:$0xff] %v74
    %81 = vst [vmem:[#allocation8] sm:$0xff] %v77
    %82 = vst [vmem:[#allocation8 + $0x8] sm:$0xff] %v78
    // Predicated region
    $region22: #{tpu_custom_call.1} parent=1 // pred_check
      _
    $region23: #{tpu_custom_call.1} parent=1 // pred_check_branch
      %84 = sbr.rel (0) target = $region25
    $region24: #{tpu_custom_call.1} parent=1 // pred_region
      %s86 = ssub.s32 256, 256
      %87 = vsyncadd [#allocation4], %s86
      %s89 = sshll.u32 [#allocation7], 4
      %s90 = int_to_ptr.vmem [resolvable:$true] %s89
      %92 = dma.vmem_to_hbm [thread:$0]  %s90, 256, %s2, [#allocation4]
    $region25: #{tpu_custom_call.1} parent=1 // pred_fallthru
      _
    // Predicated region
    $region26: #{tpu_custom_call.1} parent=1 // pred_check
      _
    $region27: #{tpu_custom_call.1} parent=1 // pred_check_branch
      %94 = sbr.rel (0) target = $region29
    $region28: #{tpu_custom_call.1} parent=1 // pred_region
      %s96 = ssub.s32 256, 256
      %97 = vsyncadd [#allocation9], %s96
      %s99 = sshll.u32 [#allocation8], 4
      %s100 = int_to_ptr.vmem [resolvable:$true] %s99
      %102 = dma.vmem_to_hbm [thread:$0]  %s100, 256, %s3, [#allocation9]
    $region29: #{tpu_custom_call.1} parent=1 // pred_fallthru
      _
    // Predicated region
    $region30: #{tpu_custom_call.1} parent=1 // pred_check
      _
    $region31: #{tpu_custom_call.1} parent=1 // pred_check_branch
      %104 = sbr.rel (0) target = $region33
    $region32: #{tpu_custom_call.1} parent=1 // pred_region
      %105 = dma.done [#allocation4], 256
    $region33: #{tpu_custom_call.1} parent=1 // pred_fallthru
      _
    // Predicated region
    $region34: #{tpu_custom_call.1} parent=1 // pred_check
      _
    $region35: #{tpu_custom_call.1} parent=1 // pred_check_branch
      %107 = sbr.rel (0) target = $region37
    $region36: #{tpu_custom_call.1} parent=1 // pred_region
      %108 = dma.done [#allocation9], 256
    $region37: #{tpu_custom_call.1} parent=1 // pred_fallthru
      _
    %109 = vsyncpa [#allocation3], 1
    %110 = vsyncpa [#allocation6], 1
    %111 = vsyncpa [#allocation4], 1
    %112 = vsyncpa [#allocation9], 1

</llo_original>
